<compile_context>
chip_gen: v7x
topology: tpu7x:2x2x1
jax: 0.10.0
libtpu: 0.0.40
codegen_flags: <defaults>
</compile_context>

<pallas_src>
import jax
import jax.numpy as jnp
from jax.experimental import pallas as pl
from jax.experimental.pallas import tpu as pltpu


def _swish_kernel(slope_ref, x_ref, o_ref):
    # slope_ref: (1, 1) f32 scalar in SMEM; x_ref/o_ref: (TILE_ROWS, LANES) in VMEM.
    x = x_ref[...]
    slope = slope_ref[0, 0].astype(x.dtype)
    z = slope * x
    # sigmoid(z) = 1 / (1 + exp(-z)); exp and reciprocal both issue on the EUP.
    sig = pl.reciprocal(1.0 + jnp.exp(-z))
    o_ref[...] = x * sig


def _choose_tiling(n_elems, itemsize):
    """Return (lanes, rows, tile_rows, padded_elems) for a flat array of n_elems."""
    # Widest lane count (multiple of 128) that divides n -> lane-dense stores, no padding.
    lanes = None
    for cand in (1024, 512, 256, 128):
        if n_elems % cand == 0:
            lanes = cand
            break
    if lanes is None:
        lanes = 128
        rows = pl.cdiv(n_elems, lanes)
    else:
        rows = n_elems // lanes
    padded = rows * lanes

    total_bytes = padded * itemsize
    # ~2 MiB blocks (>=85% of HBM roofline); keep >=2 grid steps when there is
    # enough data so both v7x TensorCores get work.
    target_bytes = min(2 * 1024 * 1024, max(total_bytes // 2, lanes * 8 * itemsize))
    tile_rows = max(8, (target_bytes // (lanes * itemsize)) // 8 * 8)
    if tile_rows >= rows:
        tile_rows = rows  # single block == full array (always a legal block shape)
    return lanes, rows, tile_rows, padded


def learned_swish(x, slope):
    """x: any shape (e.g. NCHW); slope: scalar (learned parameter * init slope)."""
    orig_shape = x.shape
    n = x.size
    itemsize = jnp.dtype(x.dtype).itemsize

    lanes, rows, tile_rows, padded = _choose_tiling(n, itemsize)

    x_flat = jnp.reshape(x, (-1,))
    needs_pad = padded != n
    if needs_pad:
        # TODO(synk): ragged tail takes a pad + slice round trip (one extra HBM pass).
        x_flat = jnp.pad(x_flat, (0, padded - n))
    x2d = jnp.reshape(x_flat, (rows, lanes))

    slope_arr = jnp.reshape(jnp.asarray(slope, dtype=jnp.float32), (1, 1))

    grid = (pl.cdiv(rows, tile_rows),)
    out2d = pl.pallas_call(
        _swish_kernel,
        out_shape=jax.ShapeDtypeStruct((rows, lanes), x2d.dtype),
        grid_spec=pltpu.PrefetchScalarGridSpec(
            num_scalar_prefetch=0,
            grid=grid,
            in_specs=[
                pl.BlockSpec(memory_space=pltpu.SMEM),              # slope scalar
                pl.BlockSpec((tile_rows, lanes), lambda i: (i, 0)),
            ],
            out_specs=pl.BlockSpec((tile_rows, lanes), lambda i: (i, 0)),
        ),
        compiler_params=pltpu.CompilerParams(
            dimension_semantics=("parallel",),
        ),
    )(slope_arr, x2d)

    if needs_pad:
        out_flat = jnp.reshape(out2d, (-1,))[:n]
        return jnp.reshape(out_flat, orig_shape)
    return jnp.reshape(out2d, orig_shape)


if __name__ == "__main__":
    key = jax.random.PRNGKey(0)

    # Deterministic parameter init: module has slope = slope_init * Parameter(ones(1)).
    slope_init = 1.0
    slope_param = jnp.ones((1,), dtype=jnp.float32)  # torch.ones(1)
    slope = slope_init * slope_param[0]

    # Example input (NCHW, matching PyTorch conv conventions).
    x = jax.random.normal(key, (2, 4, 16, 16), dtype=jnp.float32)

    out = learned_swish(x, slope)
    out = jax.block_until_ready(out)

    # Reference check in plain JAX.
    ref = x * jax.nn.sigmoid(slope * x)
    assert out.shape == x.shape
    assert out.dtype == x.dtype
    assert jnp.allclose(out, ref, atol=1e-5, rtol=1e-5)

    print("KERNEL_OK")
</pallas_src>

<mosaic_0001>
module attributes {stable_mosaic.version = 11 : i64} {
  func.func @_swish_kernel(%arg0: i32, %arg1: memref<1x1xf32, #tpu.memory_space<smem>>, %arg2: memref<2x1024xf32, #tpu.memory_space<vmem>>, %arg3: memref<2x1024xf32, #tpu.memory_space<vmem>>) attributes {dimension_semantics = [#tpu.dimension_semantics<parallel>], iteration_bounds = array<i64: 1>, scalar_prefetch = 0 : i64, scratch_operands = 0 : i64, tpu.core_type = #tpu.core_type<tc>, window_params = [{transform_indices = @transform_0, window_bounds = array<i64: 1, 1>}, {transform_indices = @transform_1, window_bounds = array<i64: 2, 1024>}, {transform_indices = @transform_2, window_bounds = array<i64: 2, 1024>}]} {
    %c0 = arith.constant 0 : index
    %c0_0 = arith.constant 0 : index
    %0 = vector.load %arg2[%c0, %c0_0] : memref<2x1024xf32, #tpu.memory_space<vmem>>, vector<2x1024xf32>
    %c0_1 = arith.constant 0 : index
    %c0_2 = arith.constant 0 : index
    %1 = memref.load %arg1[%c0_1, %c0_2] : memref<1x1xf32, #tpu.memory_space<smem>>
    %2 = vector.broadcast %1 : f32 to vector<2x1024xf32>
    %3 = arith.mulf %2, %0 : vector<2x1024xf32>
    %cst = arith.constant 0.000000e+00 : f32
    %4 = vector.broadcast %cst : f32 to vector<2x1024xf32>
    %5 = arith.subf %4, %3 : vector<2x1024xf32>
    %6 = math.exp %5 : vector<2x1024xf32>
    %cst_3 = arith.constant 1.000000e+00 : f32
    %7 = vector.broadcast %cst_3 : f32 to vector<2x1024xf32>
    %8 = arith.addf %7, %6 : vector<2x1024xf32>
    %9 = tpu.reciprocal %8 : vector<2x1024xf32> -> vector<2x1024xf32>
    %10 = arith.mulf %0, %9 : vector<2x1024xf32>
    %c0_4 = arith.constant 0 : index
    %c0_5 = arith.constant 0 : index
    %11 = vector.load %arg3[%c0_4, %c0_5] : memref<2x1024xf32, #tpu.memory_space<vmem>>, vector<2x1024xf32>
    tpu.vector_store %arg3[%c0_4, %c0_5], %10 {strides = array<i32>} : memref<2x1024xf32, #tpu.memory_space<vmem>>, vector<2x1024xf32>,
    return
  }
  func.func @transform_0(%arg0: i32) -> (i32, i32) {
    %c0_i32 = arith.constant 0 : i32
    %c0_i32_0 = arith.constant 0 : i32
    %c0_i32_1 = arith.constant 0 : i32
    return %c0_i32, %c0_i32_0 : i32, i32
  }
  func.func @transform_1(%arg0: i32) -> (i32, i32) {
    %c0_i32 = arith.constant 0 : i32
    %c0_i32_0 = arith.constant 0 : i32
    return %arg0, %c0_i32 : i32, i32
  }
  func.func @transform_2(%arg0: i32) -> (i32, i32) {
    %c0_i32 = arith.constant 0 : i32
    %c0_i32_0 = arith.constant 0 : i32
    return %arg0, %c0_i32 : i32, i32
  }
}

</mosaic_0001>

<llo_original>
// kernel: tpu_custom_call.1
$region0: #{tpu_custom_call.1}
  #allocation0 [shape = 'u32[]', space=smem, size = 0x4, offset = 0x4, fixed_abs, tag = 'smem constant byte address 0x4 - core index']
  #allocation1 [shape = 'u32[144,128]{1,0:T(1,128)}', space=vmem, size = 0x12000, scoped, tag = 'internal scratch']
  #allocation2 [shape = 'f32[1,1]{1,0:T(1,128)S(6)}', space=smem, size = 0x200, scoped, tag = 'scoped memory for tpu_custom_call.1']
  %s0 = inlined_call_operand.<no memory space> [shape: f32[1,1], index: 0, kind: input, shape index: {}]
  %s1 = inlined_call_operand.hbm [shape: f32[2,1024], index: 1, kind: input, shape index: {}]
  %s2 = inlined_call_operand.hbm [shape: f32[2,1024], index: 2, kind: output, shape index: {}]
  %s3 = sld [smem:[#allocation0]]
  $region22: #{tpu_custom_call.1} parent=0
    _
  %s5 = ssub.s32 1, %s3
  %s6 = scalar_select 0, %s5, %s3
  %7 = sst [smem:[#allocation2]] %s0
  $region1: #{tpu_custom_call.1} parent=0
    #allocation3 [shape = 'u8[8192]{0}', space=vmem, size = 0x2000, scoped, tag = 'input window, operand 1, single buffered']
    #allocation4 [shape = 's32[1]{0}', space=sflag, size = 0x4, scoped, tag = 'scoped memory for tpu_custom_call.1']
    #allocation5 [shape = 's32[1]{0}', space=sflag, size = 0x4, scoped, tag = 'scoped memory for tpu_custom_call.1']
    #allocation6 [shape = 'u8[8192]{0}', space=vmem, size = 0x2000, scoped, tag = 'output window, operand 0, single buffered']
    %8 = vsyncpa [#allocation4], 0
    %9 = vsyncpa [#allocation5], 0
    // Predicated region
    $region2: #{tpu_custom_call.1} parent=1 // pred_check
      _
    $region3: #{tpu_custom_call.1} parent=1 // pred_check_branch
      %11 = sbr.rel (0) target = $region5
    $region4: #{tpu_custom_call.1} parent=1 // pred_region
      _
    $region5: #{tpu_custom_call.1} parent=1 // pred_fallthru
      _
    // Predicated region
    $region6: #{tpu_custom_call.1} parent=1 // pred_check
      _
    $region7: #{tpu_custom_call.1} parent=1 // pred_check_branch
      %13 = sbr.rel (0) target = $region9
    $region8: #{tpu_custom_call.1} parent=1 // pred_region
      %s15 = ssub.s32 256, 256
      %16 = vsyncadd [#allocation4], %s15
      %s18 = sshll.u32 [#allocation3], 4
      %s19 = int_to_ptr.vmem [resolvable:$true] %s18
      %21 = dma.hbm_to_vmem [thread:$0]  %s1, 256, %s19, [#allocation4]
    $region9: #{tpu_custom_call.1} parent=1 // pred_fallthru
      _
    // Predicated region
    $region10: #{tpu_custom_call.1} parent=1 // pred_check
      _
    $region11: #{tpu_custom_call.1} parent=1 // pred_check_branch
      %23 = sbr.rel (0) target = $region13
    $region12: #{tpu_custom_call.1} parent=1 // pred_region
      %24 = dma.done [#allocation4], 256
    $region13: #{tpu_custom_call.1} parent=1 // pred_fallthru
      _
    %v25 = vld [vmem:[#allocation3] sm:$0xff]
    %v26 = vld [vmem:[#allocation3 + $0x8] sm:$0xff]
    %s27 = sld [smem:[#allocation2]]
    %v28 = vstv %s27
    %v29 = vmul.f32 %v28, %v25
    %v30 = vmul.f32 %v28, %v26
    %v31 = vsub.f32 0.0, %v29
    %v32 = vsub.f32 0.0, %v30
    %v33 = vmul.f32 %v31, 1.442695
    %v34 = vpow.pop %v33
    %v35 = vmul.f32 %v32, 1.442695
    %v36 = vpow.pop %v35
    %v37 = vadd.f32 %v34, 1.0
    %v38 = vadd.f32 %v36, 1.0
    %v39 = vrcp.pop %v37
    %v40 = vrcp.pop %v38
    %v41 = vmul.f32 %v25, %v39
    %v42 = vmul.f32 %v26, %v40
    %43 = vst [vmem:[#allocation6] sm:$0xff] %v41
    %44 = vst [vmem:[#allocation6 + $0x8] sm:$0xff] %v42
    // Predicated region
    $region14: #{tpu_custom_call.1} parent=1 // pred_check
      _
    $region15: #{tpu_custom_call.1} parent=1 // pred_check_branch
      %46 = sbr.rel (0) target = $region17
    $region16: #{tpu_custom_call.1} parent=1 // pred_region
      %s48 = ssub.s32 256, 256
      %49 = vsyncadd [#allocation5], %s48
      %s51 = sshll.u32 [#allocation6], 4
      %s52 = int_to_ptr.vmem [resolvable:$true] %s51
      %54 = dma.vmem_to_hbm [thread:$0]  %s52, 256, %s2, [#allocation5]
    $region17: #{tpu_custom_call.1} parent=1 // pred_fallthru
      _
    // Predicated region
    $region18: #{tpu_custom_call.1} parent=1 // pred_check
      _
    $region19: #{tpu_custom_call.1} parent=1 // pred_check_branch
      %56 = sbr.rel (0) target = $region21
    $region20: #{tpu_custom_call.1} parent=1 // pred_region
      %57 = dma.done [#allocation5], 256
    $region21: #{tpu_custom_call.1} parent=1 // pred_fallthru
      _
    %58 = vsyncpa [#allocation4], 1
    %59 = vsyncpa [#allocation5], 1

</llo_original>
